<compile_context>
chip_gen: v5e
topology: v5e:2x2
jax: 0.10.0
libtpu: 0.0.40
codegen_flags: <defaults>
</compile_context>

<pallas_src>
import jax
import jax.numpy as jnp
from jax.experimental import pallas as pl
from jax.experimental.pallas import tpu as pltpu

# Small synthetic sizes (stand-ins for e.g. resnet18: num_ftrs=512, dim=128).
B, CIN, H, W = 2, 4, 16, 16
HW = H * W
NUM_FTRS = 128     # feature channels produced by the (stand-in) backbone
DIM = 128          # SimCLR projection dim (default dim=128 in the module)
KH = KW = 3        # stand-in conv kernel
K = KH * KW * CIN  # im2col contraction dim (36)
KPAD = 128         # zero-padded, lane-dense contraction dim


# ----------------------------- Pallas kernel ------------------------------- #

def make_fused_kernel(b, hw):
    """Fused backbone-stand-in + projection head, single grid step."""

    def fused_kernel(xc_ref, wc_ref, bc_ref, w1_ref, b1_ref, w2_ref, b2_ref,
                     h_ref, z_ref):
        # --- conv (im2col) + ReLU: (B*HW, KPAD) @ (KPAD, Cf) + bias ---
        h = jnp.dot(xc_ref[...], wc_ref[...], preferred_element_type=jnp.float32)
        h = jnp.maximum(h + bc_ref[...], 0.0)                       # (b*hw, Cf)

        # Free sublane-aligned split of the leading dim (hw % 8 == 0).
        h3 = h.reshape(b, hw, h.shape[-1])                          # (b, hw, Cf)

        # h written channel-major (b, Cf, hw): in-kernel XLU transpose of the
        # VMEM-resident tile so the wrapper NCHW reshape is a no-op (no extra
        # XLA transpose pass over h through HBM). Output lanes = hw = 256
        # (multiple of 128) -> unmasked stores.
        h_ref[...] = jnp.swapaxes(h3, 1, 2).astype(h_ref.dtype)

        # AdaptiveAvgPool2d(1) + Flatten == mean over HW (sublane reduce, XLU),
        # computed on the still-VMEM-resident h (no HBM re-read).
        pooled = jnp.mean(h3, axis=1)                               # (b, Cf)

        # --- projection head: Linear -> ReLU -> Linear ---
        a = jnp.dot(pooled, w1_ref[...], preferred_element_type=jnp.float32)
        a = jnp.maximum(a + b1_ref[...], 0.0)
        z = jnp.dot(a, w2_ref[...], preferred_element_type=jnp.float32) + b2_ref[...]
        z_ref[...] = z.astype(z_ref.dtype)

    return fused_kernel


# ------------------------------- wrapper ----------------------------------- #

def init_params(key):
    k = jax.random.split(key, 5)
    scale = 0.05
    return {
        "w_conv": scale * jax.random.normal(k[0], (KH, KW, CIN, NUM_FTRS), jnp.float32),
        "b_conv": scale * jax.random.normal(k[1], (1, NUM_FTRS), jnp.float32),
        "w1": scale * jax.random.normal(k[2], (NUM_FTRS, NUM_FTRS), jnp.float32),
        "b1": scale * jax.random.normal(k[3], (1, NUM_FTRS), jnp.float32),
        "w2": scale * jax.random.normal(k[4], (NUM_FTRS, DIM), jnp.float32),
        "b2": jnp.zeros((1, DIM), jnp.float32),
    }


def simclr_forward(params, x_nchw):
    # layout: input x is NCHW (PyTorch convention); transpose to NHWC for kernels.
    b, cin, h, w = x_nchw.shape
    hw = h * w
    x = jnp.transpose(x_nchw, (0, 2, 3, 1))                       # NHWC
    x_pad = jnp.pad(x, ((0, 0), (1, 1), (1, 1), (0, 0)))          # same padding

    # im2col glue (pure reshape/slice plumbing); contraction happens in Pallas.
    cols = [x_pad[:, kh:kh + h, kw:kw + w, :]
            for kh in range(KH) for kw in range(KW)]
    x_col = jnp.concatenate(cols, axis=-1).reshape(b * hw, K)
    x_col = jnp.pad(x_col, ((0, 0), (0, KPAD - K)))               # lane-dense K
    w_col = params["w_conv"].reshape(K, NUM_FTRS)
    w_col = jnp.pad(w_col, ((0, KPAD - K), (0, 0)))               # matching zero rows

    h_cm, z = pl.pallas_call(
        make_fused_kernel(b, hw),
        out_shape=(jax.ShapeDtypeStruct((b, NUM_FTRS, hw), jnp.float32),
                   jax.ShapeDtypeStruct((b, DIM), jnp.float32)),
        grid=(1,),
        in_specs=[
            pl.BlockSpec((b * hw, KPAD), lambda i: (0, 0)),
            pl.BlockSpec((KPAD, NUM_FTRS), lambda i: (0, 0)),
            pl.BlockSpec((1, NUM_FTRS), lambda i: (0, 0)),
            pl.BlockSpec((NUM_FTRS, NUM_FTRS), lambda i: (0, 0)),
            pl.BlockSpec((1, NUM_FTRS), lambda i: (0, 0)),
            pl.BlockSpec((NUM_FTRS, DIM), lambda i: (0, 0)),
            pl.BlockSpec((1, DIM), lambda i: (0, 0)),
        ],
        out_specs=(pl.BlockSpec((b, NUM_FTRS, hw), lambda i: (0, 0, 0)),
                   pl.BlockSpec((b, DIM), lambda i: (0, 0))),
        compiler_params=pltpu.CompilerParams(
            dimension_semantics=("parallel",)),
    )(x_col, w_col, params["b_conv"],
      params["w1"], params["b1"], params["w2"], params["b2"])

    # Kernel already emits channel-major h -> this reshape is metadata-only.
    h_nchw = h_cm.reshape(b, NUM_FTRS, h, w)
    return h_nchw, z


if __name__ == "__main__":
    key = jax.random.PRNGKey(0)
    pkey, xkey = jax.random.split(key)
    params = init_params(pkey)
    x = jax.random.normal(xkey, (B, CIN, H, W), jnp.float32)   # NCHW input

    h_out, z_out = jax.jit(simclr_forward)(params, x)
    jax.block_until_ready((h_out, z_out))

    assert h_out.shape == (B, NUM_FTRS, H, W)
    assert z_out.shape == (B, DIM)
    print("KERNEL_OK")
</pallas_src>

<mosaic_0001>
module attributes {stable_mosaic.version = 11 : i64} {
  func.func @fused_kernel(%arg0: i32, %arg1: memref<512x128xf32, #tpu.memory_space<vmem>>, %arg2: memref<128x128xf32, #tpu.memory_space<vmem>>, %arg3: memref<1x128xf32, #tpu.memory_space<vmem>>, %arg4: memref<128x128xf32, #tpu.memory_space<vmem>>, %arg5: memref<1x128xf32, #tpu.memory_space<vmem>>, %arg6: memref<128x128xf32, #tpu.memory_space<vmem>>, %arg7: memref<1x128xf32, #tpu.memory_space<vmem>>, %arg8: memref<2x128x256xf32, #tpu.memory_space<vmem>>, %arg9: memref<2x128xf32, #tpu.memory_space<vmem>>) attributes {dimension_semantics = [#tpu.dimension_semantics<parallel>], iteration_bounds = array<i64: 1>, scalar_prefetch = 0 : i64, scratch_operands = 0 : i64, tpu.core_type = #tpu.core_type<tc>, window_params = [{pipeline_mode = #tpu.pipeline_mode<synchronous>, transform_indices = @transform_0, window_bounds = array<i64: 512, 128>}, {pipeline_mode = #tpu.pipeline_mode<synchronous>, transform_indices = @transform_1, window_bounds = array<i64: 128, 128>}, {pipeline_mode = #tpu.pipeline_mode<synchronous>, transform_indices = @transform_2, window_bounds = array<i64: 1, 128>}, {pipeline_mode = #tpu.pipeline_mode<synchronous>, transform_indices = @transform_3, window_bounds = array<i64: 128, 128>}, {pipeline_mode = #tpu.pipeline_mode<synchronous>, transform_indices = @transform_4, window_bounds = array<i64: 1, 128>}, {pipeline_mode = #tpu.pipeline_mode<synchronous>, transform_indices = @transform_5, window_bounds = array<i64: 128, 128>}, {pipeline_mode = #tpu.pipeline_mode<synchronous>, transform_indices = @transform_6, window_bounds = array<i64: 1, 128>}, {pipeline_mode = #tpu.pipeline_mode<synchronous>, transform_indices = @transform_7, window_bounds = array<i64: 2, 128, 256>}, {pipeline_mode = #tpu.pipeline_mode<synchronous>, transform_indices = @transform_8, window_bounds = array<i64: 2, 128>}]} {
    %c0 = arith.constant 0 : index
    %c0_0 = arith.constant 0 : index
    %0 = vector.load %arg1[%c0, %c0_0] : memref<512x128xf32, #tpu.memory_space<vmem>>, vector<512x128xf32>
    %c0_1 = arith.constant 0 : index
    %c0_2 = arith.constant 0 : index
    %1 = vector.load %arg2[%c0_1, %c0_2] : memref<128x128xf32, #tpu.memory_space<vmem>>, vector<128x128xf32>
    %cst = arith.constant dense<0.000000e+00> : vector<512x128xf32>
    %2 = tpu.matmul %0, %1, %cst {dimension_numbers = #tpu.dot_dimension_numbers<[1], [0], [0], [1], [0, 0, 1, 1], [], []>} : vector<512x128xf32>, vector<128x128xf32>, vector<512x128xf32> -> vector<512x128xf32>
    %c0_3 = arith.constant 0 : index
    %c0_4 = arith.constant 0 : index
    %3 = vector.load %arg3[%c0_3, %c0_4] : memref<1x128xf32, #tpu.memory_space<vmem>>, vector<1x128xf32>
    %4 = vector.broadcast %3 : vector<1x128xf32> to vector<512x128xf32>
    %5 = arith.addf %2, %4 : vector<512x128xf32>
    %cst_5 = arith.constant 0.000000e+00 : f32
    %6 = vector.broadcast %cst_5 : f32 to vector<512x128xf32>
    %7 = arith.maximumf %5, %6 : vector<512x128xf32>
    %8 = vector.shape_cast %7 : vector<512x128xf32> to vector<2x256x128xf32>
    %9 = tpu.transpose %8, [0, 2, 1] : vector<2x256x128xf32> -> vector<2x128x256xf32>
    %c0_6 = arith.constant 0 : index
    %c0_7 = arith.constant 0 : index
    %c0_8 = arith.constant 0 : index
    %10 = vector.load %arg8[%c0_6, %c0_7, %c0_8] : memref<2x128x256xf32, #tpu.memory_space<vmem>>, vector<2x128x256xf32>
    tpu.vector_store %arg8[%c0_6, %c0_7, %c0_8], %9 {strides = array<i32>} : memref<2x128x256xf32, #tpu.memory_space<vmem>>, vector<2x128x256xf32>,
    %cst_9 = arith.constant dense<0.000000e+00> : vector<2x128xf32>
    %11 = vector.multi_reduction <add>, %8, %cst_9 [1] : vector<2x256x128xf32> to vector<2x128xf32>
    %cst_10 = arith.constant 2.560000e+02 : f32
    %12 = vector.broadcast %cst_10 : f32 to vector<2x128xf32>
    %13 = arith.divf %11, %12 : vector<2x128xf32>
    %c0_11 = arith.constant 0 : index
    %c0_12 = arith.constant 0 : index
    %14 = vector.load %arg4[%c0_11, %c0_12] : memref<128x128xf32, #tpu.memory_space<vmem>>, vector<128x128xf32>
    %cst_13 = arith.constant dense<0.000000e+00> : vector<2x128xf32>
    %15 = tpu.matmul %13, %14, %cst_13 {dimension_numbers = #tpu.dot_dimension_numbers<[1], [0], [0], [1], [0, 0, 1, 1], [], []>} : vector<2x128xf32>, vector<128x128xf32>, vector<2x128xf32> -> vector<2x128xf32>
    %c0_14 = arith.constant 0 : index
    %c0_15 = arith.constant 0 : index
    %16 = vector.load %arg5[%c0_14, %c0_15] : memref<1x128xf32, #tpu.memory_space<vmem>>, vector<1x128xf32>
    %17 = vector.broadcast %16 : vector<1x128xf32> to vector<2x128xf32>
    %18 = arith.addf %15, %17 : vector<2x128xf32>
    %cst_16 = arith.constant 0.000000e+00 : f32
    %19 = vector.broadcast %cst_16 : f32 to vector<2x128xf32>
    %20 = arith.maximumf %18, %19 : vector<2x128xf32>
    %c0_17 = arith.constant 0 : index
    %c0_18 = arith.constant 0 : index
    %21 = vector.load %arg6[%c0_17, %c0_18] : memref<128x128xf32, #tpu.memory_space<vmem>>, vector<128x128xf32>
    %cst_19 = arith.constant dense<0.000000e+00> : vector<2x128xf32>
    %22 = tpu.matmul %20, %21, %cst_19 {dimension_numbers = #tpu.dot_dimension_numbers<[1], [0], [0], [1], [0, 0, 1, 1], [], []>} : vector<2x128xf32>, vector<128x128xf32>, vector<2x128xf32> -> vector<2x128xf32>
    %c0_20 = arith.constant 0 : index
    %c0_21 = arith.constant 0 : index
    %23 = vector.load %arg7[%c0_20, %c0_21] : memref<1x128xf32, #tpu.memory_space<vmem>>, vector<1x128xf32>
    %24 = vector.broadcast %23 : vector<1x128xf32> to vector<2x128xf32>
    %25 = arith.addf %22, %24 : vector<2x128xf32>
    %c0_22 = arith.constant 0 : index
    %c0_23 = arith.constant 0 : index
    %26 = vector.load %arg9[%c0_22, %c0_23] : memref<2x128xf32, #tpu.memory_space<vmem>>, vector<2x128xf32>
    tpu.vector_store %arg9[%c0_22, %c0_23], %25 {strides = array<i32>} : memref<2x128xf32, #tpu.memory_space<vmem>>, vector<2x128xf32>,
    return
  }
  func.func @transform_0(%arg0: i32) -> (i32, i32) {
    %c0_i32 = arith.constant 0 : i32
    %c0_i32_0 = arith.constant 0 : i32
    %c0_i32_1 = arith.constant 0 : i32
    return %c0_i32, %c0_i32_0 : i32, i32
  }
  func.func @transform_1(%arg0: i32) -> (i32, i32) {
    %c0_i32 = arith.constant 0 : i32
    %c0_i32_0 = arith.constant 0 : i32
    %c0_i32_1 = arith.constant 0 : i32
    return %c0_i32, %c0_i32_0 : i32, i32
  }
  func.func @transform_2(%arg0: i32) -> (i32, i32) {
    %c0_i32 = arith.constant 0 : i32
    %c0_i32_0 = arith.constant 0 : i32
    %c0_i32_1 = arith.constant 0 : i32
    return %c0_i32, %c0_i32_0 : i32, i32
  }
  func.func @transform_3(%arg0: i32) -> (i32, i32) {
    %c0_i32 = arith.constant 0 : i32
    %c0_i32_0 = arith.constant 0 : i32
    %c0_i32_1 = arith.constant 0 : i32
    return %c0_i32, %c0_i32_0 : i32, i32
  }
  func.func @transform_4(%arg0: i32) -> (i32, i32) {
    %c0_i32 = arith.constant 0 : i32
    %c0_i32_0 = arith.constant 0 : i32
    %c0_i32_1 = arith.constant 0 : i32
    return %c0_i32, %c0_i32_0 : i32, i32
  }
  func.func @transform_5(%arg0: i32) -> (i32, i32) {
    %c0_i32 = arith.constant 0 : i32
    %c0_i32_0 = arith.constant 0 : i32
    %c0_i32_1 = arith.constant 0 : i32
    return %c0_i32, %c0_i32_0 : i32, i32
  }
  func.func @transform_6(%arg0: i32) -> (i32, i32) {
    %c0_i32 = arith.constant 0 : i32
    %c0_i32_0 = arith.constant 0 : i32
    %c0_i32_1 = arith.constant 0 : i32
    return %c0_i32, %c0_i32_0 : i32, i32
  }
  func.func @transform_7(%arg0: i32) -> (i32, i32, i32) {
    %c0_i32 = arith.constant 0 : i32
    %c0_i32_0 = arith.constant 0 : i32
    %c0_i32_1 = arith.constant 0 : i32
    %c0_i32_2 = arith.constant 0 : i32
    return %c0_i32, %c0_i32_0, %c0_i32_1 : i32, i32, i32
  }
  func.func @transform_8(%arg0: i32) -> (i32, i32) {
    %c0_i32 = arith.constant 0 : i32
    %c0_i32_0 = arith.constant 0 : i32
    %c0_i32_1 = arith.constant 0 : i32
    return %c0_i32, %c0_i32_0 : i32, i32
  }
}

</mosaic_0001>

<llo_original>
// kernel: simclr_forward.1
$region0: #{simclr_forward.1}
  #allocation0 [shape = 'u32[]', space=smem, size = 0x4, offset = 0x4, fixed_abs, tag = 'smem constant byte address 0x4 - core index']
  #allocation1 [shape = 'u32[72,128]{1,0:T(1,128)}', space=vmem, size = 0x9000, scoped, tag = 'internal scratch']
  %s0 = inlined_call_operand.vmem [shape: f32[512,128], index: 0, kind: input, shape index: {}]
  %s1 = inlined_call_operand.vmem [shape: f32[128,128], index: 1, kind: input, shape index: {}]
  %s2 = inlined_call_operand.vmem [shape: f32[1,128], index: 2, kind: input, shape index: {}]
  %s3 = inlined_call_operand.vmem [shape: f32[128,128], index: 3, kind: input, shape index: {}]
  %s4 = inlined_call_operand.vmem [shape: f32[1,128], index: 4, kind: input, shape index: {}]
  %s5 = inlined_call_operand.vmem [shape: f32[128,128], index: 5, kind: input, shape index: {}]
  %s6 = inlined_call_operand.vmem [shape: f32[1,128], index: 6, kind: input, shape index: {}]
  %s7 = inlined_call_operand.vmem [shape: f32[2,128,256], index: 7, kind: output, shape index: {0}]
  %s8 = inlined_call_operand.hbm [shape: f32[2,128], index: 8, kind: output, shape index: {1}]
  %9 = xla_tuple %s7, %s8
  %s10 = sld [smem:[#allocation0]]
  $region46: #{simclr_forward.1} parent=0
    _
  %s12 = ssub.s32 1, %s10
  %s13 = scalar_select 0, %s12, %s10
  $region1: #{simclr_forward.1} parent=0
    #allocation2 [shape = 'u8[1024]{0}', space=vmem, size = 0x400, scoped, tag = 'output window, operand 1, single buffered']
    #allocation3 [shape = 's32[1]{0}', space=sflag, size = 0x4, scoped, tag = 'scoped memory for simclr_forward.1']
    %14 = vsyncpa [#allocation3], 0
    // Predicated region
    $region2: #{simclr_forward.1} parent=1 // pred_check
      _
    $region3: #{simclr_forward.1} parent=1 // pred_check_branch
      %16 = sbr.rel (0) target = $region5
    $region4: #{simclr_forward.1} parent=1 // pred_region
      _
    $region5: #{simclr_forward.1} parent=1 // pred_fallthru
      _
    // Predicated region
    $region6: #{simclr_forward.1} parent=1 // pred_check
      _
    $region7: #{simclr_forward.1} parent=1 // pred_check_branch
      %18 = sbr.rel (0) target = $region9
    $region8: #{simclr_forward.1} parent=1 // pred_region
      _
    $region9: #{simclr_forward.1} parent=1 // pred_fallthru
      _
    // Predicated region
    $region10: #{simclr_forward.1} parent=1 // pred_check
      _
    $region11: #{simclr_forward.1} parent=1 // pred_check_branch
      %20 = sbr.rel (0) target = $region13
    $region12: #{simclr_forward.1} parent=1 // pred_region
      _
    $region13: #{simclr_forward.1} parent=1 // pred_fallthru
      _
    // Predicated region
    $region14: #{simclr_forward.1} parent=1 // pred_check
      _
    $region15: #{simclr_forward.1} parent=1 // pred_check_branch
      %22 = sbr.rel (0) target = $region17
    $region16: #{simclr_forward.1} parent=1 // pred_region
      _
    $region17: #{simclr_forward.1} parent=1 // pred_fallthru
      _
    // Predicated region
    $region18: #{simclr_forward.1} parent=1 // pred_check
      _
    $region19: #{simclr_forward.1} parent=1 // pred_check_branch
      %24 = sbr.rel (0) target = $region21
    $region20: #{simclr_forward.1} parent=1 // pred_region
      _
    $region21: #{simclr_forward.1} parent=1 // pred_fallthru
      _
    // Predicated region
    $region22: #{simclr_forward.1} parent=1 // pred_check
      _
    $region23: #{simclr_forward.1} parent=1 // pred_check_branch
      %26 = sbr.rel (0) target = $region25
    $region24: #{simclr_forward.1} parent=1 // pred_region
      _
    $region25: #{simclr_forward.1} parent=1 // pred_fallthru
      _
    // Predicated region
    $region26: #{simclr_forward.1} parent=1 // pred_check
      _
    $region27: #{simclr_forward.1} parent=1 // pred_check_branch
      %28 = sbr.rel (0) target = $region29
    $region28: #{simclr_forward.1} parent=1 // pred_region
      _
    $region29: #{simclr_forward.1} parent=1 // pred_fallthru
      _
    %v29 = vld [vmem:[%s0] sm:$0xff]
    %v30 = vld [vmem:[%s0 + $0x8] sm:$0xff]
    %v31 = vld [vmem:[%s0 + $0x10] sm:$0xff]
    %v32 = vld [vmem:[%s0 + $0x18] sm:$0xff]
    %v33 = vld [vmem:[%s0 + $0x20] sm:$0xff]
    %v34 = vld [vmem:[%s0 + $0x28] sm:$0xff]
    %v35 = vld [vmem:[%s0 + $0x30] sm:$0xff]
    %v36 = vld [vmem:[%s0 + $0x38] sm:$0xff]
    %v37 = vld [vmem:[%s0 + $0x40] sm:$0xff]
    %v38 = vld [vmem:[%s0 + $0x48] sm:$0xff]
    %v39 = vld [vmem:[%s0 + $0x50] sm:$0xff]
    %v40 = vld [vmem:[%s0 + $0x58] sm:$0xff]
    %v41 = vld [vmem:[%s0 + $0x60] sm:$0xff]
    %v42 = vld [vmem:[%s0 + $0x68] sm:$0xff]
    %v43 = vld [vmem:[%s0 + $0x70] sm:$0xff]
    %v44 = vld [vmem:[%s0 + $0x78] sm:$0xff]
    %v45 = vld [vmem:[%s0 + $0x80] sm:$0xff]
    %v46 = vld [vmem:[%s0 + $0x88] sm:$0xff]
    %v47 = vld [vmem:[%s0 + $0x90] sm:$0xff]
    %v48 = vld [vmem:[%s0 + $0x98] sm:$0xff]
    %v49 = vld [vmem:[%s0 + $0xa0] sm:$0xff]
    %v50 = vld [vmem:[%s0 + $0xa8] sm:$0xff]
    %v51 = vld [vmem:[%s0 + $0xb0] sm:$0xff]
    %v52 = vld [vmem:[%s0 + $0xb8] sm:$0xff]
    %v53 = vld [vmem:[%s0 + $0xc0] sm:$0xff]
    %v54 = vld [vmem:[%s0 + $0xc8] sm:$0xff]
    %v55 = vld [vmem:[%s0 + $0xd0] sm:$0xff]
    %v56 = vld [vmem:[%s0 + $0xd8] sm:$0xff]
    %v57 = vld [vmem:[%s0 + $0xe0] sm:$0xff]
    %v58 = vld [vmem:[%s0 + $0xe8] sm:$0xff]
    %v59 = vld [vmem:[%s0 + $0xf0] sm:$0xff]
    %v60 = vld [vmem:[%s0 + $0xf8] sm:$0xff]
    %v61 = vld [vmem:[%s0 + $0x100] sm:$0xff]
    %v62 = vld [vmem:[%s0 + $0x108] sm:$0xff]
    %v63 = vld [vmem:[%s0 + $0x110] sm:$0xff]
    %v64 = vld [vmem:[%s0 + $0x118] sm:$0xff]
    %v65 = vld [vmem:[%s0 + $0x120] sm:$0xff]
    %v66 = vld [vmem:[%s0 + $0x128] sm:$0xff]
    %v67 = vld [vmem:[%s0 + $0x130] sm:$0xff]
    %v68 = vld [vmem:[%s0 + $0x138] sm:$0xff]
    %v69 = vld [vmem:[%s0 + $0x140] sm:$0xff]
    %v70 = vld [vmem:[%s0 + $0x148] sm:$0xff]
    %v71 = vld [vmem:[%s0 + $0x150] sm:$0xff]
    %v72 = vld [vmem:[%s0 + $0x158] sm:$0xff]
    %v73 = vld [vmem:[%s0 + $0x160] sm:$0xff]
    %v74 = vld [vmem:[%s0 + $0x168] sm:$0xff]
    %v75 = vld [vmem:[%s0 + $0x170] sm:$0xff]
    %v76 = vld [vmem:[%s0 + $0x178] sm:$0xff]
    %v77 = vld [vmem:[%s0 + $0x180] sm:$0xff]
    %v78 = vld [vmem:[%s0 + $0x188] sm:$0xff]
    %v79 = vld [vmem:[%s0 + $0x190] sm:$0xff]
    %v80 = vld [vmem:[%s0 + $0x198] sm:$0xff]
    %v81 = vld [vmem:[%s0 + $0x1a0] sm:$0xff]
    %v82 = vld [vmem:[%s0 + $0x1a8] sm:$0xff]
    %v83 = vld [vmem:[%s0 + $0x1b0] sm:$0xff]
    %v84 = vld [vmem:[%s0 + $0x1b8] sm:$0xff]
    %v85 = vld [vmem:[%s0 + $0x1c0] sm:$0xff]
    %v86 = vld [vmem:[%s0 + $0x1c8] sm:$0xff]
    %v87 = vld [vmem:[%s0 + $0x1d0] sm:$0xff]
    %v88 = vld [vmem:[%s0 + $0x1d8] sm:$0xff]
    %v89 = vld [vmem:[%s0 + $0x1e0] sm:$0xff]
    %v90 = vld [vmem:[%s0 + $0x1e8] sm:$0xff]
    %v91 = vld [vmem:[%s0 + $0x1f0] sm:$0xff]
    %v92 = vld [vmem:[%s0 + $0x1f8] sm:$0xff]
    %v93 = vld [vmem:[%s1] sm:$0xff]
    %v94 = vld [vmem:[%s1 + $0x8] sm:$0xff]
    %v95 = vld [vmem:[%s1 + $0x10] sm:$0xff]
    %v96 = vld [vmem:[%s1 + $0x18] sm:$0xff]
    %v97 = vld [vmem:[%s1 + $0x20] sm:$0xff]
    %v98 = vld [vmem:[%s1 + $0x28] sm:$0xff]
    %v99 = vld [vmem:[%s1 + $0x30] sm:$0xff]
    %v100 = vld [vmem:[%s1 + $0x38] sm:$0xff]
    %v101 = vld [vmem:[%s1 + $0x40] sm:$0xff]
    %v102 = vld [vmem:[%s1 + $0x48] sm:$0xff]
    %v103 = vld [vmem:[%s1 + $0x50] sm:$0xff]
    %v104 = vld [vmem:[%s1 + $0x58] sm:$0xff]
    %v105 = vld [vmem:[%s1 + $0x60] sm:$0xff]
    %v106 = vld [vmem:[%s1 + $0x68] sm:$0xff]
    %v107 = vld [vmem:[%s1 + $0x70] sm:$0xff]
    %v108 = vld [vmem:[%s1 + $0x78] sm:$0xff]
    %v109 = vld [vmem:[%s2] sm:$0x1]
    %v111 = vperm.slane %v109, 0
    %113 = vmatpush.msra.mxu0 %v108
    %114 = vmatpush.msra.mxu0 %v107
    %115 = vmatpush.msra.mxu0 %v106
    %116 = vmatpush.msra.mxu0 %v105
    %117 = vmatpush.msra.mxu0 %v104
    %118 = vmatpush.msra.mxu0 %v103
    %119 = vmatpush.msra.mxu0 %v102
    %120 = vmatpush.msra.mxu0 %v101
    %121 = vmatpush.msra.mxu0 %v100
    %122 = vmatpush.msra.mxu0 %v99
    %123 = vmatpush.msra.mxu0 %v98
    %124 = vmatpush.msra.mxu0 %v97
    %125 = vmatpush.msra.mxu0 %v96
    %126 = vmatpush.msra.mxu0 %v95
    %127 = vmatpush.msra.mxu0 %v94
    %128 = vmatpush.msra.mxu0 %v93
    %129 = vmatmul.f32.gmra.mxu0 %v29
    %v130 = vpop.f32.mrf.mxu0
    %v131 = vadd.f32 %v111, %v130
    %132 = vmatmul.f32.gmra.mxu0 %v30
    %v133 = vpop.f32.mrf.mxu0
    %v134 = vadd.f32 %v111, %v133
    %135 = vmatmul.f32.gmra.mxu0 %v31
    %v136 = vpop.f32.mrf.mxu0
    %v137 = vadd.f32 %v111, %v136
    %138 = vmatmul.f32.gmra.mxu0 %v32
    %v139 = vpop.f32.mrf.mxu0
    %v140 = vadd.f32 %v111, %v139
    %141 = vmatmul.f32.gmra.mxu0 %v33
    %v142 = vpop.f32.mrf.mxu0
    %v143 = vadd.f32 %v111, %v142
    %144 = vmatmul.f32.gmra.mxu0 %v34
    %v145 = vpop.f32.mrf.mxu0
    %v146 = vadd.f32 %v111, %v145
    %147 = vmatmul.f32.gmra.mxu0 %v35
    %v148 = vpop.f32.mrf.mxu0
    %v149 = vadd.f32 %v111, %v148
    %150 = vmatmul.f32.gmra.mxu0 %v36
    %v151 = vpop.f32.mrf.mxu0
    %v152 = vadd.f32 %v111, %v151
    %153 = vmatmul.f32.gmra.mxu0 %v37
    %v154 = vpop.f32.mrf.mxu0
    %v155 = vadd.f32 %v111, %v154
    %156 = vmatmul.f32.gmra.mxu0 %v38
    %v157 = vpop.f32.mrf.mxu0
    %v158 = vadd.f32 %v111, %v157
    %159 = vmatmul.f32.gmra.mxu0 %v39
    %v160 = vpop.f32.mrf.mxu0
    %v161 = vadd.f32 %v111, %v160
    %162 = vmatmul.f32.gmra.mxu0 %v40
    %v163 = vpop.f32.mrf.mxu0
    %v164 = vadd.f32 %v111, %v163
    %165 = vmatmul.f32.gmra.mxu0 %v41
    %v166 = vpop.f32.mrf.mxu0
    %v167 = vadd.f32 %v111, %v166
    %168 = vmatmul.f32.gmra.mxu0 %v42
    %v169 = vpop.f32.mrf.mxu0
    %v170 = vadd.f32 %v111, %v169
    %171 = vmatmul.f32.gmra.mxu0 %v43
    %v172 = vpop.f32.mrf.mxu0
    %v173 = vadd.f32 %v111, %v172
    %174 = vmatmul.f32.gmra.mxu0 %v44
    %v175 = vpop.f32.mrf.mxu0
    %v176 = vadd.f32 %v111, %v175
    %177 = vmatmul.f32.gmra.mxu0 %v45
    %v178 = vpop.f32.mrf.mxu0
    %v179 = vadd.f32 %v111, %v178
    %180 = vmatmul.f32.gmra.mxu0 %v46
    %v181 = vpop.f32.mrf.mxu0
    %v182 = vadd.f32 %v111, %v181
    %183 = vmatmul.f32.gmra.mxu0 %v47
    %v184 = vpop.f32.mrf.mxu0
    %v185 = vadd.f32 %v111, %v184
    %186 = vmatmul.f32.gmra.mxu0 %v48
    %v187 = vpop.f32.mrf.mxu0
    %v188 = vadd.f32 %v111, %v187
    %189 = vmatmul.f32.gmra.mxu0 %v49
    %v190 = vpop.f32.mrf.mxu0
    %v191 = vadd.f32 %v111, %v190
    %192 = vmatmul.f32.gmra.mxu0 %v50
    %v193 = vpop.f32.mrf.mxu0
    %v194 = vadd.f32 %v111, %v193
    %195 = vmatmul.f32.gmra.mxu0 %v51
    %v196 = vpop.f32.mrf.mxu0
    %v197 = vadd.f32 %v111, %v196
    %198 = vmatmul.f32.gmra.mxu0 %v52
    %v199 = vpop.f32.mrf.mxu0
    %v200 = vadd.f32 %v111, %v199
    %201 = vmatmul.f32.gmra.mxu0 %v53
    %v202 = vpop.f32.mrf.mxu0
    %v203 = vadd.f32 %v111, %v202
    %204 = vmatmul.f32.gmra.mxu0 %v54
    %v205 = vpop.f32.mrf.mxu0
    %v206 = vadd.f32 %v111, %v205
    %207 = vmatmul.f32.gmra.mxu0 %v55
    %v208 = vpop.f32.mrf.mxu0
    %v209 = vadd.f32 %v111, %v208
    %210 = vmatmul.f32.gmra.mxu0 %v56
    %v211 = vpop.f32.mrf.mxu0
    %v212 = vadd.f32 %v111, %v211
    %213 = vmatmul.f32.gmra.mxu0 %v57
    %v214 = vpop.f32.mrf.mxu0
    %v215 = vadd.f32 %v111, %v214
    %216 = vmatmul.f32.gmra.mxu0 %v58
    %v217 = vpop.f32.mrf.mxu0
    %v218 = vadd.f32 %v111, %v217
    %219 = vmatmul.f32.gmra.mxu0 %v59
    %v220 = vpop.f32.mrf.mxu0
    %v221 = vadd.f32 %v111, %v220
    %222 = vmatmul.f32.gmra.mxu0 %v60
    %v223 = vpop.f32.mrf.mxu0
    %v224 = vadd.f32 %v111, %v223
    %225 = vmatmul.f32.gmra.mxu0 %v61
    %v226 = vpop.f32.mrf.mxu0
    %v227 = vadd.f32 %v111, %v226
    %228 = vmatmul.f32.gmra.mxu0 %v62
    %v229 = vpop.f32.mrf.mxu0
    %v230 = vadd.f32 %v111, %v229
    %231 = vmatmul.f32.gmra.mxu0 %v63
    %v232 = vpop.f32.mrf.mxu0
    %v233 = vadd.f32 %v111, %v232
    %234 = vmatmul.f32.gmra.mxu0 %v64
    %v235 = vpop.f32.mrf.mxu0
    %v236 = vadd.f32 %v111, %v235
    %237 = vmatmul.f32.gmra.mxu0 %v65
    %v238 = vpop.f32.mrf.mxu0
    %v239 = vadd.f32 %v111, %v238
    %240 = vmatmul.f32.gmra.mxu0 %v66
    %v241 = vpop.f32.mrf.mxu0
    %v242 = vadd.f32 %v111, %v241
    %243 = vmatmul.f32.gmra.mxu0 %v67
    %v244 = vpop.f32.mrf.mxu0
    %v245 = vadd.f32 %v111, %v244
    %246 = vmatmul.f32.gmra.mxu0 %v68
    %v247 = vpop.f32.mrf.mxu0
    %v248 = vadd.f32 %v111, %v247
    %249 = vmatmul.f32.gmra.mxu0 %v69
    %v250 = vpop.f32.mrf.mxu0
    %v251 = vadd.f32 %v111, %v250
    %252 = vmatmul.f32.gmra.mxu0 %v70
    %v253 = vpop.f32.mrf.mxu0
    %v254 = vadd.f32 %v111, %v253
    %255 = vmatmul.f32.gmra.mxu0 %v71
    %v256 = vpop.f32.mrf.mxu0
    %v257 = vadd.f32 %v111, %v256
    %258 = vmatmul.f32.gmra.mxu0 %v72
    %v259 = vpop.f32.mrf.mxu0
    %v260 = vadd.f32 %v111, %v259
    %261 = vmatmul.f32.gmra.mxu0 %v73
    %v262 = vpop.f32.mrf.mxu0
    %v263 = vadd.f32 %v111, %v262
    %264 = vmatmul.f32.gmra.mxu0 %v74
    %v265 = vpop.f32.mrf.mxu0
    %v266 = vadd.f32 %v111, %v265
    %267 = vmatmul.f32.gmra.mxu0 %v75
    %v268 = vpop.f32.mrf.mxu0
    %v269 = vadd.f32 %v111, %v268
    %270 = vmatmul.f32.gmra.mxu0 %v76
    %v271 = vpop.f32.mrf.mxu0
    %v272 = vadd.f32 %v111, %v271
    %273 = vmatmul.f32.gmra.mxu0 %v77
    %v274 = vpop.f32.mrf.mxu0
    %v275 = vadd.f32 %v111, %v274
    %276 = vmatmul.f32.gmra.mxu0 %v78
    %v277 = vpop.f32.mrf.mxu0
    %v278 = vadd.f32 %v111, %v277
    %279 = vmatmul.f32.gmra.mxu0 %v79
    %v280 = vpop.f32.mrf.mxu0
    %v281 = vadd.f32 %v111, %v280
    %282 = vmatmul.f32.gmra.mxu0 %v80
    %v283 = vpop.f32.mrf.mxu0
    %v284 = vadd.f32 %v111, %v283
    %285 = vmatmul.f32.gmra.mxu0 %v81
    %v286 = vpop.f32.mrf.mxu0
    %v287 = vadd.f32 %v111, %v286
    %288 = vmatmul.f32.gmra.mxu0 %v82
    %v289 = vpop.f32.mrf.mxu0
    %v290 = vadd.f32 %v111, %v289
    %291 = vmatmul.f32.gmra.mxu0 %v83
    %v292 = vpop.f32.mrf.mxu0
    %v293 = vadd.f32 %v111, %v292
    %294 = vmatmul.f32.gmra.mxu0 %v84
    %v295 = vpop.f32.mrf.mxu0
    %v296 = vadd.f32 %v111, %v295
    %297 = vmatmul.f32.gmra.mxu0 %v85
    %v298 = vpop.f32.mrf.mxu0
    %v299 = vadd.f32 %v111, %v298
    %300 = vmatmul.f32.gmra.mxu0 %v86
    %v301 = vpop.f32.mrf.mxu0
    %v302 = vadd.f32 %v111, %v301
    %303 = vmatmul.f32.gmra.mxu0 %v87
    %v304 = vpop.f32.mrf.mxu0
    %v305 = vadd.f32 %v111, %v304
    %306 = vmatmul.f32.gmra.mxu0 %v88
    %v307 = vpop.f32.mrf.mxu0
    %v308 = vadd.f32 %v111, %v307
    %309 = vmatmul.f32.gmra.mxu0 %v89
    %v310 = vpop.f32.mrf.mxu0
    %v311 = vadd.f32 %v111, %v310
    %312 = vmatmul.f32.gmra.mxu0 %v90
    %v313 = vpop.f32.mrf.mxu0
    %v314 = vadd.f32 %v111, %v313
    %315 = vmatmul.f32.gmra.mxu0 %v91
    %v316 = vpop.f32.mrf.mxu0
    %v317 = vadd.f32 %v111, %v316
    %318 = vmatmul.f32.gmra.mxu0 %v92
    %v319 = vpop.f32.mrf.mxu0
    %v320 = vadd.f32 %v111, %v319
    %321 = vdwg.mxu0
    %v322 = vmax.f32 %v131, 0.0
    %v323 = vmax.f32 %v134, 0.0
    %v324 = vmax.f32 %v137, 0.0
    %v325 = vmax.f32 %v140, 0.0
    %v326 = vmax.f32 %v143, 0.0
    %v327 = vmax.f32 %v146, 0.0
    %v328 = vmax.f32 %v149, 0.0
    %v329 = vmax.f32 %v152, 0.0
    %v330 = vmax.f32 %v155, 0.0
    %v331 = vmax.f32 %v158, 0.0
    %v332 = vmax.f32 %v161, 0.0
    %v333 = vmax.f32 %v164, 0.0
    %v334 = vmax.f32 %v167, 0.0
    %v335 = vmax.f32 %v170, 0.0
    %v336 = vmax.f32 %v173, 0.0
    %v337 = vmax.f32 %v176, 0.0
    %v338 = vmax.f32 %v179, 0.0
    %v339 = vmax.f32 %v182, 0.0
    %v340 = vmax.f32 %v185, 0.0
    %v341 = vmax.f32 %v188, 0.0
    %v342 = vmax.f32 %v191, 0.0
    %v343 = vmax.f32 %v194, 0.0
    %v344 = vmax.f32 %v197, 0.0
    %v345 = vmax.f32 %v200, 0.0
    %v346 = vmax.f32 %v203, 0.0
    %v347 = vmax.f32 %v206, 0.0
    %v348 = vmax.f32 %v209, 0.0
    %v349 = vmax.f32 %v212, 0.0
    %v350 = vmax.f32 %v215, 0.0
    %v351 = vmax.f32 %v218, 0.0
    %v352 = vmax.f32 %v221, 0.0
    %v353 = vmax.f32 %v224, 0.0
    %v354 = vmax.f32 %v227, 0.0
    %v355 = vmax.f32 %v230, 0.0
    %v356 = vmax.f32 %v233, 0.0
    %v357 = vmax.f32 %v236, 0.0
    %v358 = vmax.f32 %v239, 0.0
    %v359 = vmax.f32 %v242, 0.0
    %v360 = vmax.f32 %v245, 0.0
    %v361 = vmax.f32 %v248, 0.0
    %v362 = vmax.f32 %v251, 0.0
    %v363 = vmax.f32 %v254, 0.0
    %v364 = vmax.f32 %v257, 0.0
    %v365 = vmax.f32 %v260, 0.0
    %v366 = vmax.f32 %v263, 0.0
    %v367 = vmax.f32 %v266, 0.0
    %v368 = vmax.f32 %v269, 0.0
    %v369 = vmax.f32 %v272, 0.0
    %v370 = vmax.f32 %v275, 0.0
    %v371 = vmax.f32 %v278, 0.0
    %v372 = vmax.f32 %v281, 0.0
    %v373 = vmax.f32 %v284, 0.0
    %v374 = vmax.f32 %v287, 0.0
    %v375 = vmax.f32 %v290, 0.0
    %v376 = vmax.f32 %v293, 0.0
    %v377 = vmax.f32 %v296, 0.0
    %v378 = vmax.f32 %v299, 0.0
    %v379 = vmax.f32 %v302, 0.0
    %v380 = vmax.f32 %v305, 0.0
    %v381 = vmax.f32 %v308, 0.0
    %v382 = vmax.f32 %v311, 0.0
    %v383 = vmax.f32 %v314, 0.0
    %v384 = vmax.f32 %v317, 0.0
    %v385 = vmax.f32 %v320, 0.0
    %386 = vxpose.xlu0.b32.start [1/16] %v322, 128
    %387 = vxpose.xlu0.b32.cont [2/16] %v323, 128
    %388 = vxpose.xlu0.b32.cont [3/16] %v324, 128
    %389 = vxpose.xlu0.b32.cont [4/16] %v325, 128
    %390 = vxpose.xlu0.b32.cont [5/16] %v326, 128
    %391 = vxpose.xlu0.b32.cont [6/16] %v327, 128
    %392 = vxpose.xlu0.b32.cont [7/16] %v328, 128
    %393 = vxpose.xlu0.b32.cont [8/16] %v329, 128
    %394 = vxpose.xlu0.b32.cont [9/16] %v330, 128
    %395 = vxpose.xlu0.b32.cont [10/16] %v331, 128
    %396 = vxpose.xlu0.b32.cont [11/16] %v332, 128
    %397 = vxpose.xlu0.b32.cont [12/16] %v333, 128
    %398 = vxpose.xlu0.b32.cont [13/16] %v334, 128
    %399 = vxpose.xlu0.b32.cont [14/16] %v335, 128
    %400 = vxpose.xlu0.b32.cont [15/16] %v336, 128
    %401 = vxpose.xlu0.b32.end [16/16] %v337, 128
    %v402 = vpop.trf.xlu0
    %v403 = vpop.trf.xlu0
    %v404 = vpop.trf.xlu0
    %v405 = vpop.trf.xlu0
    %v406 = vpop.trf.xlu0
    %v407 = vpop.trf.xlu0
    %v408 = vpop.trf.xlu0
    %v409 = vpop.trf.xlu0
    %v410 = vpop.trf.xlu0
    %v411 = vpop.trf.xlu0
    %v412 = vpop.trf.xlu0
    %v413 = vpop.trf.xlu0
    %v414 = vpop.trf.xlu0
    %v415 = vpop.trf.xlu0
    %v416 = vpop.trf.xlu0
    %v417 = vpop.trf.xlu0
    %418 = vxpose.xlu0.b32.start [1/16] %v338, 128
    %419 = vxpose.xlu0.b32.cont [2/16] %v339, 128
    %420 = vxpose.xlu0.b32.cont [3/16] %v340, 128
    %421 = vxpose.xlu0.b32.cont [4/16] %v341, 128
    %422 = vxpose.xlu0.b32.cont [5/16] %v342, 128
    %423 = vxpose.xlu0.b32.cont [6/16] %v343, 128
    %424 = vxpose.xlu0.b32.cont [7/16] %v344, 128
    %425 = vxpose.xlu0.b32.cont [8/16] %v345, 128
    %426 = vxpose.xlu0.b32.cont [9/16] %v346, 128
    %427 = vxpose.xlu0.b32.cont [10/16] %v347, 128
    %428 = vxpose.xlu0.b32.cont [11/16] %v348, 128
    %429 = vxpose.xlu0.b32.cont [12/16] %v349, 128
    %430 = vxpose.xlu0.b32.cont [13/16] %v350, 128
    %431 = vxpose.xlu0.b32.cont [14/16] %v351, 128
    %432 = vxpose.xlu0.b32.cont [15/16] %v352, 128
    %433 = vxpose.xlu0.b32.end [16/16] %v353, 128
    %v434 = vpop.trf.xlu0
    %v435 = vpop.trf.xlu0
    %v436 = vpop.trf.xlu0
    %v437 = vpop.trf.xlu0
    %v438 = vpop.trf.xlu0
    %v439 = vpop.trf.xlu0
    %v440 = vpop.trf.xlu0
    %v441 = vpop.trf.xlu0
    %v442 = vpop.trf.xlu0
    %v443 = vpop.trf.xlu0
    %v444 = vpop.trf.xlu0
    %v445 = vpop.trf.xlu0
    %v446 = vpop.trf.xlu0
    %v447 = vpop.trf.xlu0
    %v448 = vpop.trf.xlu0
    %v449 = vpop.trf.xlu0
    %450 = vxpose.xlu0.b32.start [1/16] %v354, 128
    %451 = vxpose.xlu0.b32.cont [2/16] %v355, 128
    %452 = vxpose.xlu0.b32.cont [3/16] %v356, 128
    %453 = vxpose.xlu0.b32.cont [4/16] %v357, 128
    %454 = vxpose.xlu0.b32.cont [5/16] %v358, 128
    %455 = vxpose.xlu0.b32.cont [6/16] %v359, 128
    %456 = vxpose.xlu0.b32.cont [7/16] %v360, 128
    %457 = vxpose.xlu0.b32.cont [8/16] %v361, 128
    %458 = vxpose.xlu0.b32.cont [9/16] %v362, 128
    %459 = vxpose.xlu0.b32.cont [10/16] %v363, 128
    %460 = vxpose.xlu0.b32.cont [11/16] %v364, 128
    %461 = vxpose.xlu0.b32.cont [12/16] %v365, 128
    %462 = vxpose.xlu0.b32.cont [13/16] %v366, 128
    %463 = vxpose.xlu0.b32.cont [14/16] %v367, 128
    %464 = vxpose.xlu0.b32.cont [15/16] %v368, 128
    %465 = vxpose.xlu0.b32.end [16/16] %v369, 128
    %v466 = vpop.trf.xlu0
    %v467 = vpop.trf.xlu0
    %v468 = vpop.trf.xlu0
    %v469 = vpop.trf.xlu0
    %v470 = vpop.trf.xlu0
    %v471 = vpop.trf.xlu0
    %v472 = vpop.trf.xlu0
    %v473 = vpop.trf.xlu0
    %v474 = vpop.trf.xlu0
    %v475 = vpop.trf.xlu0
    %v476 = vpop.trf.xlu0
    %v477 = vpop.trf.xlu0
    %v478 = vpop.trf.xlu0
    %v479 = vpop.trf.xlu0
    %v480 = vpop.trf.xlu0
    %v481 = vpop.trf.xlu0
    %482 = vxpose.xlu0.b32.start [1/16] %v370, 128
    %483 = vxpose.xlu0.b32.cont [2/16] %v371, 128
    %484 = vxpose.xlu0.b32.cont [3/16] %v372, 128
    %485 = vxpose.xlu0.b32.cont [4/16] %v373, 128
    %486 = vxpose.xlu0.b32.cont [5/16] %v374, 128
    %487 = vxpose.xlu0.b32.cont [6/16] %v375, 128
    %488 = vxpose.xlu0.b32.cont [7/16] %v376, 128
    %489 = vxpose.xlu0.b32.cont [8/16] %v377, 128
    %490 = vxpose.xlu0.b32.cont [9/16] %v378, 128
    %491 = vxpose.xlu0.b32.cont [10/16] %v379, 128
    %492 = vxpose.xlu0.b32.cont [11/16] %v380, 128
    %493 = vxpose.xlu0.b32.cont [12/16] %v381, 128
    %494 = vxpose.xlu0.b32.cont [13/16] %v382, 128
    %495 = vxpose.xlu0.b32.cont [14/16] %v383, 128
    %496 = vxpose.xlu0.b32.cont [15/16] %v384, 128
    %497 = vxpose.xlu0.b32.end [16/16] %v385, 128
    %v498 = vpop.trf.xlu0
    %v499 = vpop.trf.xlu0
    %v500 = vpop.trf.xlu0
    %v501 = vpop.trf.xlu0
    %v502 = vpop.trf.xlu0
    %v503 = vpop.trf.xlu0
    %v504 = vpop.trf.xlu0
    %v505 = vpop.trf.xlu0
    %v506 = vpop.trf.xlu0
    %v507 = vpop.trf.xlu0
    %v508 = vpop.trf.xlu0
    %v509 = vpop.trf.xlu0
    %v510 = vpop.trf.xlu0
    %v511 = vpop.trf.xlu0
    %v512 = vpop.trf.xlu0
    %v513 = vpop.trf.xlu0
    %514 = vst [vmem:[%s7] sm:$0xff] %v402
    %515 = vst [vmem:[%s7 + $0x8] sm:$0xff] %v434
    %516 = vst [vmem:[%s7 + $0x10] sm:$0xff] %v403
    %517 = vst [vmem:[%s7 + $0x18] sm:$0xff] %v435
    %518 = vst [vmem:[%s7 + $0x20] sm:$0xff] %v404
    %519 = vst [vmem:[%s7 + $0x28] sm:$0xff] %v436
    %520 = vst [vmem:[%s7 + $0x30] sm:$0xff] %v405
    %521 = vst [vmem:[%s7 + $0x38] sm:$0xff] %v437
    %522 = vst [vmem:[%s7 + $0x40] sm:$0xff] %v406
    %523 = vst [vmem:[%s7 + $0x48] sm:$0xff] %v438
    %524 = vst [vmem:[%s7 + $0x50] sm:$0xff] %v407
    %525 = vst [vmem:[%s7 + $0x58] sm:$0xff] %v439
    %526 = vst [vmem:[%s7 + $0x60] sm:$0xff] %v408
    %527 = vst [vmem:[%s7 + $0x68] sm:$0xff] %v440
    %528 = vst [vmem:[%s7 + $0x70] sm:$0xff] %v409
    %529 = vst [vmem:[%s7 + $0x78] sm:$0xff] %v441
    %530 = vst [vmem:[%s7 + $0x80] sm:$0xff] %v410
    %531 = vst [vmem:[%s7 + $0x88] sm:$0xff] %v442
    %532 = vst [vmem:[%s7 + $0x90] sm:$0xff] %v411
    %533 = vst [vmem:[%s7 + $0x98] sm:$0xff] %v443
    %534 = vst [vmem:[%s7 + $0xa0] sm:$0xff] %v412
    %535 = vst [vmem:[%s7 + $0xa8] sm:$0xff] %v444
    %536 = vst [vmem:[%s7 + $0xb0] sm:$0xff] %v413
    %537 = vst [vmem:[%s7 + $0xb8] sm:$0xff] %v445
    %538 = vst [vmem:[%s7 + $0xc0] sm:$0xff] %v414
    %539 = vst [vmem:[%s7 + $0xc8] sm:$0xff] %v446
    %540 = vst [vmem:[%s7 + $0xd0] sm:$0xff] %v415
    %541 = vst [vmem:[%s7 + $0xd8] sm:$0xff] %v447
    %542 = vst [vmem:[%s7 + $0xe0] sm:$0xff] %v416
    %543 = vst [vmem:[%s7 + $0xe8] sm:$0xff] %v448
    %544 = vst [vmem:[%s7 + $0xf0] sm:$0xff] %v417
    %545 = vst [vmem:[%s7 + $0xf8] sm:$0xff] %v449
    %546 = vst [vmem:[%s7 + $0x100] sm:$0xff] %v466
    %547 = vst [vmem:[%s7 + $0x108] sm:$0xff] %v498
    %548 = vst [vmem:[%s7 + $0x110] sm:$0xff] %v467
    %549 = vst [vmem:[%s7 + $0x118] sm:$0xff] %v499
    %550 = vst [vmem:[%s7 + $0x120] sm:$0xff] %v468
    %551 = vst [vmem:[%s7 + $0x128] sm:$0xff] %v500
    %552 = vst [vmem:[%s7 + $0x130] sm:$0xff] %v469
    %553 = vst [vmem:[%s7 + $0x138] sm:$0xff] %v501
    %554 = vst [vmem:[%s7 + $0x140] sm:$0xff] %v470
    %555 = vst [vmem:[%s7 + $0x148] sm:$0xff] %v502
    %556 = vst [vmem:[%s7 + $0x150] sm:$0xff] %v471
    %557 = vst [vmem:[%s7 + $0x158] sm:$0xff] %v503
    %558 = vst [vmem:[%s7 + $0x160] sm:$0xff] %v472
    %559 = vst [vmem:[%s7 + $0x168] sm:$0xff] %v504
    %560 = vst [vmem:[%s7 + $0x170] sm:$0xff] %v473
    %561 = vst [vmem:[%s7 + $0x178] sm:$0xff] %v505
    %562 = vst [vmem:[%s7 + $0x180] sm:$0xff] %v474
    %563 = vst [vmem:[%s7 + $0x188] sm:$0xff] %v506
    %564 = vst [vmem:[%s7 + $0x190] sm:$0xff] %v475
    %565 = vst [vmem:[%s7 + $0x198] sm:$0xff] %v507
    %566 = vst [vmem:[%s7 + $0x1a0] sm:$0xff] %v476
    %567 = vst [vmem:[%s7 + $0x1a8] sm:$0xff] %v508
    %568 = vst [vmem:[%s7 + $0x1b0] sm:$0xff] %v477
    %569 = vst [vmem:[%s7 + $0x1b8] sm:$0xff] %v509
    %570 = vst [vmem:[%s7 + $0x1c0] sm:$0xff] %v478
    %571 = vst [vmem:[%s7 + $0x1c8] sm:$0xff] %v510
    %572 = vst [vmem:[%s7 + $0x1d0] sm:$0xff] %v479
    %573 = vst [vmem:[%s7 + $0x1d8] sm:$0xff] %v511
    %574 = vst [vmem:[%s7 + $0x1e0] sm:$0xff] %v480
    %575 = vst [vmem:[%s7 + $0x1e8] sm:$0xff] %v512
    %576 = vst [vmem:[%s7 + $0x1f0] sm:$0xff] %v481
    %577 = vst [vmem:[%s7 + $0x1f8] sm:$0xff] %v513
    %v578 = vadd.f32 %v322, %v323
    %v579 = vadd.f32 %v578, %v324
    %v580 = vadd.f32 %v579, %v325
    %v581 = vadd.f32 %v580, %v326
    %v582 = vadd.f32 %v581, %v327
    %v583 = vadd.f32 %v582, %v328
    %v584 = vadd.f32 %v583, %v329
    %v585 = vadd.f32 %v584, %v330
    %v586 = vadd.f32 %v585, %v331
    %v587 = vadd.f32 %v586, %v332
    %v588 = vadd.f32 %v587, %v333
    %v589 = vadd.f32 %v588, %v334
    %v590 = vadd.f32 %v589, %v335
    %v591 = vadd.f32 %v590, %v336
    %v592 = vadd.f32 %v591, %v337
    %v593 = vadd.f32 %v592, %v338
    %v594 = vadd.f32 %v593, %v339
    %v595 = vadd.f32 %v594, %v340
    %v596 = vadd.f32 %v595, %v341
    %v597 = vadd.f32 %v596, %v342
    %v598 = vadd.f32 %v597, %v343
    %v599 = vadd.f32 %v598, %v344
    %v600 = vadd.f32 %v599, %v345
    %v601 = vadd.f32 %v600, %v346
    %v602 = vadd.f32 %v601, %v347
    %v603 = vadd.f32 %v602, %v348
    %v604 = vadd.f32 %v603, %v349
    %v605 = vadd.f32 %v604, %v350
    %v606 = vadd.f32 %v605, %v351
    %v607 = vadd.f32 %v606, %v352
    %v608 = vadd.f32 %v607, %v353
    %v609 = vrot.slane %v608, 4
    %v610 = vadd.f32 %v608, %v609
    %v611 = vrot.slane %v610, 2
    %v612 = vadd.f32 %v610, %v611
    %v613 = vrot.slane %v612, 1
    %v614 = vadd.f32 %v612, %v613
    %v615 = vadd.f32 %v354, %v355
    %v616 = vadd.f32 %v615, %v356
    %v617 = vadd.f32 %v616, %v357
    %v618 = vadd.f32 %v617, %v358
    %v619 = vadd.f32 %v618, %v359
    %v620 = vadd.f32 %v619, %v360
    %v621 = vadd.f32 %v620, %v361
    %v622 = vadd.f32 %v621, %v362
    %v623 = vadd.f32 %v622, %v363
    %v624 = vadd.f32 %v623, %v364
    %v625 = vadd.f32 %v624, %v365
    %v626 = vadd.f32 %v625, %v366
    %v627 = vadd.f32 %v626, %v367
    %v628 = vadd.f32 %v627, %v368
    %v629 = vadd.f32 %v628, %v369
    %v630 = vadd.f32 %v629, %v370
    %v631 = vadd.f32 %v630, %v371
    %v632 = vadd.f32 %v631, %v372
    %v633 = vadd.f32 %v632, %v373
    %v634 = vadd.f32 %v633, %v374
    %v635 = vadd.f32 %v634, %v375
    %v636 = vadd.f32 %v635, %v376
    %v637 = vadd.f32 %v636, %v377
    %v638 = vadd.f32 %v637, %v378
    %v639 = vadd.f32 %v638, %v379
    %v640 = vadd.f32 %v639, %v380
    %v641 = vadd.f32 %v640, %v381
    %v642 = vadd.f32 %v641, %v382
    %v643 = vadd.f32 %v642, %v383
    %v644 = vadd.f32 %v643, %v384
    %v645 = vadd.f32 %v644, %v385
    %v646 = vrot.slane %v645, 4
    %v647 = vadd.f32 %v645, %v646
    %v648 = vrot.slane %v647, 2
    %v649 = vadd.f32 %v647, %v648
    %v650 = vrot.slane %v649, 1
    %v651 = vadd.f32 %v649, %v650
    %v652 = vrcp.pop 256.0
    %v653 = vmul.f32 256.0, %v652
    %v654 = vsub.f32 1.0, %v653
    %v655 = vmul.f32 %v652, %v654
    %v656 = vadd.f32 %v652, %v655
    %vm657 = vweird.f32 %v652
    %v658 = vsel %vm657, %v652, %v656
    %v659 = vmul.f32 %v614, %v658
    %v660 = vmul.f32 %v651, %v658
    %v661 = vld [vmem:[%s3] sm:$0xff]
    %v662 = vld [vmem:[%s3 + $0x8] sm:$0xff]
    %v663 = vld [vmem:[%s3 + $0x10] sm:$0xff]
    %v664 = vld [vmem:[%s3 + $0x18] sm:$0xff]
    %v665 = vld [vmem:[%s3 + $0x20] sm:$0xff]
    %v666 = vld [vmem:[%s3 + $0x28] sm:$0xff]
    %v667 = vld [vmem:[%s3 + $0x30] sm:$0xff]
    %v668 = vld [vmem:[%s3 + $0x38] sm:$0xff]
    %v669 = vld [vmem:[%s3 + $0x40] sm:$0xff]
    %v670 = vld [vmem:[%s3 + $0x48] sm:$0xff]
    %v671 = vld [vmem:[%s3 + $0x50] sm:$0xff]
    %v672 = vld [vmem:[%s3 + $0x58] sm:$0xff]
    %v673 = vld [vmem:[%s3 + $0x60] sm:$0xff]
    %v674 = vld [vmem:[%s3 + $0x68] sm:$0xff]
    %v675 = vld [vmem:[%s3 + $0x70] sm:$0xff]
    %v676 = vld [vmem:[%s3 + $0x78] sm:$0xff]
    %v677 = vld [vmem:[%s4] sm:$0x1]
    %v679 = vperm.slane %v677, 0
    %vm683 = vcmask 1041409
    %v684 = vsel %vm683, %v660, %v659
    %686 = vmatpush.msra.mxu0 %v676
    %687 = vmatpush.msra.mxu0 %v675
    %688 = vmatpush.msra.mxu0 %v674
    %689 = vmatpush.msra.mxu0 %v673
    %690 = vmatpush.msra.mxu0 %v672
    %691 = vmatpush.msra.mxu0 %v671
    %692 = vmatpush.msra.mxu0 %v670
    %693 = vmatpush.msra.mxu0 %v669
    %694 = vmatpush.msra.mxu0 %v668
    %695 = vmatpush.msra.mxu0 %v667
    %696 = vmatpush.msra.mxu0 %v666
    %697 = vmatpush.msra.mxu0 %v665
    %698 = vmatpush.msra.mxu0 %v664
    %699 = vmatpush.msra.mxu0 %v663
    %700 = vmatpush.msra.mxu0 %v662
    %701 = vmatpush.msra.mxu0 %v661
    %702 = vmatmul.f32.gmra.mxu0 %v684
    %v703 = vpop.f32.mrf.mxu0
    %v704 = vadd.f32 %v679, %v703
    %705 = vdwg.mxu0
    %v706 = vmax.f32 %v704, 0.0
    %v707 = vld [vmem:[%s5] sm:$0xff]
    %v708 = vld [vmem:[%s5 + $0x8] sm:$0xff]
    %v709 = vld [vmem:[%s5 + $0x10] sm:$0xff]
    %v710 = vld [vmem:[%s5 + $0x18] sm:$0xff]
    %v711 = vld [vmem:[%s5 + $0x20] sm:$0xff]
    %v712 = vld [vmem:[%s5 + $0x28] sm:$0xff]
    %v713 = vld [vmem:[%s5 + $0x30] sm:$0xff]
    %v714 = vld [vmem:[%s5 + $0x38] sm:$0xff]
    %v715 = vld [vmem:[%s5 + $0x40] sm:$0xff]
    %v716 = vld [vmem:[%s5 + $0x48] sm:$0xff]
    %v717 = vld [vmem:[%s5 + $0x50] sm:$0xff]
    %v718 = vld [vmem:[%s5 + $0x58] sm:$0xff]
    %v719 = vld [vmem:[%s5 + $0x60] sm:$0xff]
    %v720 = vld [vmem:[%s5 + $0x68] sm:$0xff]
    %v721 = vld [vmem:[%s5 + $0x70] sm:$0xff]
    %v722 = vld [vmem:[%s5 + $0x78] sm:$0xff]
    %v723 = vld [vmem:[%s6] sm:$0x1]
    %v725 = vperm.slane %v723, 0
    %727 = vmatpush.msra.mxu0 %v722
    %728 = vmatpush.msra.mxu0 %v721
    %729 = vmatpush.msra.mxu0 %v720
    %730 = vmatpush.msra.mxu0 %v719
    %731 = vmatpush.msra.mxu0 %v718
    %732 = vmatpush.msra.mxu0 %v717
    %733 = vmatpush.msra.mxu0 %v716
    %734 = vmatpush.msra.mxu0 %v715
    %735 = vmatpush.msra.mxu0 %v714
    %736 = vmatpush.msra.mxu0 %v713
    %737 = vmatpush.msra.mxu0 %v712
    %738 = vmatpush.msra.mxu0 %v711
    %739 = vmatpush.msra.mxu0 %v710
    %740 = vmatpush.msra.mxu0 %v709
    %741 = vmatpush.msra.mxu0 %v708
    %742 = vmatpush.msra.mxu0 %v707
    %743 = vmatmul.f32.gmra.mxu0 %v706
    %v744 = vpop.f32.mrf.mxu0
    %v745 = vadd.f32 %v725, %v744
    %746 = vdwg.mxu0
    %747 = vst [vmem:[#allocation2] sm:$0x3] %v745
    // Predicated region
    $region30: #{simclr_forward.1} parent=1 // pred_check
      _
    $region31: #{simclr_forward.1} parent=1 // pred_check_branch
      %749 = sbr.rel (0) target = $region33
    $region32: #{simclr_forward.1} parent=1 // pred_region
      _
    $region33: #{simclr_forward.1} parent=1 // pred_fallthru
      _
    // Predicated region
    $region34: #{simclr_forward.1} parent=1 // pred_check
      _
    $region35: #{simclr_forward.1} parent=1 // pred_check_branch
      %751 = sbr.rel (0) target = $region37
    $region36: #{simclr_forward.1} parent=1 // pred_region
      %753 = vsyncadd [#allocation3], 0
      %s755 = sshll.u32 [#allocation2], 4
      %s756 = int_to_ptr.vmem [resolvable:$true] %s755
      %s757 = sshll.u32 %s8, 4
      %s758 = int_to_ptr.hbm [resolvable:$true] %s757
      %760 = dma.vmem_to_hbm [thread:$0]  %s756, 32, %s758, [#allocation3]
    $region37: #{simclr_forward.1} parent=1 // pred_fallthru
      _
    // Predicated region
    $region38: #{simclr_forward.1} parent=1 // pred_check
      _
    $region39: #{simclr_forward.1} parent=1 // pred_check_branch
      %762 = sbr.rel (0) target = $region41
    $region40: #{simclr_forward.1} parent=1 // pred_region
      _
    $region41: #{simclr_forward.1} parent=1 // pred_fallthru
      _
    // Predicated region
    $region42: #{simclr_forward.1} parent=1 // pred_check
      _
    $region43: #{simclr_forward.1} parent=1 // pred_check_branch
      %764 = sbr.rel (0) target = $region45
    $region44: #{simclr_forward.1} parent=1 // pred_region
      %766 = dma.done [#allocation3], 32
    $region45: #{simclr_forward.1} parent=1 // pred_fallthru
      _
    %767 = vsyncpa [#allocation3], 1

</llo_original>
